<compile_context>
chip_gen: v7x
topology: tpu7x:2x2x1
jax: 0.10.0
libtpu: 0.0.40
codegen_flags: <defaults>
</compile_context>

<pallas_src>
import functools

import jax
import jax.numpy as jnp
from jax.experimental import pallas as pl
from jax.experimental.pallas import tpu as pltpu


def _round_up(n, m):
    return ((n + m - 1) // m) * m


def _perceptron_kernel(x_ref, w_ref, b_ref, o_ref):
    # x_ref : (TB, F) VMEM -- batch rows on sublanes, features on lanes
    # w_ref : (1, F)  VMEM -- weight row, same block every step
    # b_ref : (1, 1)  SMEM -- scalar bias
    # o_ref : (TB, 1) VMEM -- per-row logit -> sigmoid
    x = x_ref[...]                                           # (TB, F)
    w = w_ref[...]                                           # (1, F) broadcasts over rows
    b = b_ref[0, 0]                                          # scalar from SMEM
    # N=1 dot product: VPU multiply + lane (XLU) reduce; no MXU involved.
    # Mosaic masks the reduction to the logical F=25 lanes, not the padded 128.
    logits = jnp.sum(x * w, axis=1, keepdims=True) + b       # (TB, 1)
    o_ref[...] = jax.nn.sigmoid(logits).astype(o_ref.dtype)


@functools.partial(jax.jit, static_argnames=("tile_b",))
def perceptron_forward(x, w, b, *, tile_b=16384):
    """sigmoid(x @ w + b). x: (B, F) f32, w: (F, 1) f32, b: (1, 1) f32 -> (B, 1) f32."""
    B, F = x.shape

    # One-time tiny reshapes (25 floats / 1 float): weight row + scalar bias.
    w_row = jnp.reshape(w, (1, F))
    b_2d = jnp.reshape(b, (1, 1))

    # Batch tile: big enough to amortize the ~0.35us/step overhead, small enough that
    # double-buffered (tb, 128-lane-padded) input + output fit v7x's 64 MiB VMEM, and
    # ~B/4 at moderate B so v7x's 2 TensorCores each see >= 2 grid steps.
    tb = min(tile_b, max(128, _round_up(-(-B // 4), 128)))
    tb = min(tb, _round_up(B, 8))          # never larger than (sublane-rounded) B
    grid = (pl.cdiv(B, tb),)               # no explicit padding; trailing block is masked

    out = pl.pallas_call(
        _perceptron_kernel,
        out_shape=jax.ShapeDtypeStruct((B, 1), jnp.float32),
        grid_spec=pltpu.PrefetchScalarGridSpec(
            num_scalar_prefetch=0,
            grid=grid,
            in_specs=[
                # (tb, F): tb is a multiple of 8, F equals the full last dim (25).
                pl.BlockSpec((tb, F), lambda i: (i, 0)),
                # Full (1, F) weight row, same block every step.
                pl.BlockSpec((1, F), lambda i: (0, 0)),
                # Scalar bias in SMEM.
                pl.BlockSpec(memory_space=pltpu.MemorySpace.SMEM),
            ],
            out_specs=pl.BlockSpec((tb, 1), lambda i: (i, 0)),
        ),
        compiler_params=pltpu.CompilerParams(
            # Batch tiles are independent -> shard across v7x's 2 TensorCores.
            dimension_semantics=("parallel",),
            # ~32 MiB of double buffers at tb=16384; stay under v7x's 64 MiB physical.
            vmem_limit_bytes=48 << 20,
        ),
    )(x, w_row, b_2d)

    return out


if __name__ == "__main__":
    key = jax.random.PRNGKey(0)
    k_x, k_w, k_b = jax.random.split(key, 3)

    B, F = 8, 25  # nn.Linear(25, 1): 25 input features, 1 output unit

    x = jax.random.normal(k_x, (B, F), dtype=jnp.float32)

    # Deterministic init mimicking nn.Linear default: U(-1/sqrt(F), 1/sqrt(F))
    bound = 1.0 / jnp.sqrt(jnp.float32(F))
    w = jax.random.uniform(k_w, (F, 1), dtype=jnp.float32, minval=-bound, maxval=bound)
    b = jax.random.uniform(k_b, (1, 1), dtype=jnp.float32, minval=-bound, maxval=bound)

    out = perceptron_forward(x, w, b)
    out = jax.block_until_ready(out)

    # Reference check in plain JAX
    ref = jax.nn.sigmoid(x @ w + b)
    assert out.shape == (B, 1)
    assert jnp.allclose(out, ref, atol=1e-5, rtol=1e-5)

    print("KERNEL_OK")
</pallas_src>

<mosaic_0001>
module attributes {stable_mosaic.version = 11 : i64} {
  func.func @_perceptron_kernel(%arg0: i32, %arg1: memref<8x25xf32, #tpu.memory_space<vmem>>, %arg2: memref<1x25xf32, #tpu.memory_space<vmem>>, %arg3: memref<1x1xf32, #tpu.memory_space<smem>>, %arg4: memref<8x1xf32, #tpu.memory_space<vmem>>) attributes {dimension_semantics = [#tpu.dimension_semantics<parallel>], iteration_bounds = array<i64: 1>, scalar_prefetch = 0 : i64, scratch_operands = 0 : i64, tpu.core_type = #tpu.core_type<tc>, window_params = [{transform_indices = @transform_0, window_bounds = array<i64: 8, 25>}, {pipeline_mode = #tpu.pipeline_mode<synchronous>, transform_indices = @transform_1, window_bounds = array<i64: 1, 25>}, {transform_indices = @transform_2, window_bounds = array<i64: 1, 1>}, {transform_indices = @transform_3, window_bounds = array<i64: 8, 1>}]} {
    %c0 = arith.constant 0 : index
    %c0_0 = arith.constant 0 : index
    %0 = vector.load %arg1[%c0, %c0_0] : memref<8x25xf32, #tpu.memory_space<vmem>>, vector<8x25xf32>
    %c0_1 = arith.constant 0 : index
    %c0_2 = arith.constant 0 : index
    %1 = vector.load %arg2[%c0_1, %c0_2] : memref<1x25xf32, #tpu.memory_space<vmem>>, vector<1x25xf32>
    %c0_3 = arith.constant 0 : index
    %c0_4 = arith.constant 0 : index
    %2 = memref.load %arg3[%c0_3, %c0_4] : memref<1x1xf32, #tpu.memory_space<smem>>
    %3 = vector.broadcast %1 : vector<1x25xf32> to vector<8x25xf32>
    %4 = arith.mulf %0, %3 : vector<8x25xf32>
    %cst = arith.constant dense<0.000000e+00> : vector<8xf32>
    %5 = vector.multi_reduction <add>, %4, %cst [1] : vector<8x25xf32> to vector<8xf32>
    %6 = vector.shape_cast %5 : vector<8xf32> to vector<8x1xf32>
    %7 = vector.broadcast %2 : f32 to vector<8x1xf32>
    %8 = arith.addf %6, %7 : vector<8x1xf32>
    %9 = arith.negf %8 : vector<8x1xf32>
    %10 = math.exp %9 : vector<8x1xf32>
    %cst_5 = arith.constant 1.000000e+00 : f32
    %11 = vector.broadcast %cst_5 : f32 to vector<8x1xf32>
    %12 = arith.addf %11, %10 : vector<8x1xf32>
    %13 = arith.divf %11, %12 : vector<8x1xf32>
    %c0_6 = arith.constant 0 : index
    %c0_7 = arith.constant 0 : index
    %14 = vector.load %arg4[%c0_6, %c0_7] : memref<8x1xf32, #tpu.memory_space<vmem>>, vector<8x1xf32>
    tpu.vector_store %arg4[%c0_6, %c0_7], %13 {strides = array<i32>} : memref<8x1xf32, #tpu.memory_space<vmem>>, vector<8x1xf32>,
    return
  }
  func.func @transform_0(%arg0: i32) -> (i32, i32) {
    %c0_i32 = arith.constant 0 : i32
    %c0_i32_0 = arith.constant 0 : i32
    return %arg0, %c0_i32 : i32, i32
  }
  func.func @transform_1(%arg0: i32) -> (i32, i32) {
    %c0_i32 = arith.constant 0 : i32
    %c0_i32_0 = arith.constant 0 : i32
    %c0_i32_1 = arith.constant 0 : i32
    return %c0_i32, %c0_i32_0 : i32, i32
  }
  func.func @transform_2(%arg0: i32) -> (i32, i32) {
    %c0_i32 = arith.constant 0 : i32
    %c0_i32_0 = arith.constant 0 : i32
    %c0_i32_1 = arith.constant 0 : i32
    return %c0_i32, %c0_i32_0 : i32, i32
  }
  func.func @transform_3(%arg0: i32) -> (i32, i32) {
    %c0_i32 = arith.constant 0 : i32
    %c0_i32_0 = arith.constant 0 : i32
    return %arg0, %c0_i32 : i32, i32
  }
}

</mosaic_0001>

<llo_original>
// kernel: perceptron_forward.1
$region0: #{perceptron_forward.1}
  #allocation0 [shape = 'u32[]', space=smem, size = 0x4, offset = 0x4, fixed_abs, tag = 'smem constant byte address 0x4 - core index']
  #allocation1 [shape = 'u32[144,128]{1,0:T(1,128)}', space=vmem, size = 0x12000, scoped, tag = 'internal scratch']
  #allocation2 [shape = 'f32[1,1]{1,0:T(1,128)S(6)}', space=smem, size = 0x200, scoped, tag = 'scoped memory for perceptron_forward.1']
  %s0 = inlined_call_operand.hbm [shape: f32[8,25], index: 0, kind: input, shape index: {}]
  %s1 = inlined_call_operand.vmem [shape: f32[1,25], index: 1, kind: input, shape index: {}]
  %s2 = inlined_call_operand.<no memory space> [shape: f32[1,1], index: 2, kind: input, shape index: {}]
  %s3 = inlined_call_operand.vmem [shape: f32[8,1], index: 3, kind: output, shape index: {}]
  %s4 = sld [smem:[#allocation0]]
  $region26: #{perceptron_forward.1} parent=0
    _
  %s6 = ssub.s32 1, %s4
  %s7 = scalar_select 0, %s6, %s4
  %8 = sst [smem:[#allocation2]] %s2
  $region1: #{perceptron_forward.1} parent=0
    #allocation3 [shape = 'u8[4096]{0}', space=vmem, size = 0x1000, scoped, tag = 'input window, operand 0, single buffered']
    #allocation4 [shape = 's32[1]{0}', space=sflag, size = 0x4, scoped, tag = 'scoped memory for perceptron_forward.1']
    %9 = vsyncpa [#allocation4], 0
    // Predicated region
    $region2: #{perceptron_forward.1} parent=1 // pred_check
      _
    $region3: #{perceptron_forward.1} parent=1 // pred_check_branch
      %11 = sbr.rel (0) target = $region5
    $region4: #{perceptron_forward.1} parent=1 // pred_region
      %s13 = ssub.s32 128, 128
      %14 = vsyncadd [#allocation4], %s13
      %s16 = sshll.u32 [#allocation3], 4
      %s17 = int_to_ptr.vmem [resolvable:$true] %s16
      %19 = dma.hbm_to_vmem [thread:$0]  %s0, 128, %s17, [#allocation4]
    $region5: #{perceptron_forward.1} parent=1 // pred_fallthru
      _
    // Predicated region
    $region6: #{perceptron_forward.1} parent=1 // pred_check
      _
    $region7: #{perceptron_forward.1} parent=1 // pred_check_branch
      %21 = sbr.rel (0) target = $region9
    $region8: #{perceptron_forward.1} parent=1 // pred_region
      _
    $region9: #{perceptron_forward.1} parent=1 // pred_fallthru
      _
    // Predicated region
    $region10: #{perceptron_forward.1} parent=1 // pred_check
      _
    $region11: #{perceptron_forward.1} parent=1 // pred_check_branch
      %23 = sbr.rel (0) target = $region13
    $region12: #{perceptron_forward.1} parent=1 // pred_region
      _
    $region13: #{perceptron_forward.1} parent=1 // pred_fallthru
      _
    // Predicated region
    $region14: #{perceptron_forward.1} parent=1 // pred_check
      _
    $region15: #{perceptron_forward.1} parent=1 // pred_check_branch
      %25 = sbr.rel (0) target = $region17
    $region16: #{perceptron_forward.1} parent=1 // pred_region
      %26 = dma.done [#allocation4], 128
    $region17: #{perceptron_forward.1} parent=1 // pred_fallthru
      _
    %v27 = vld [vmem:[#allocation3] sm:$0xff]
    %v28 = vld [vmem:[%s1] sm:$0x1]
    %s29 = sld [smem:[#allocation2]]
    %v31 = vlaneseq
    %v32 = vshrl.u32 %v31, 7
    %v33 = vsub.s32 0, %v32
    %v34 = vrot.slane %v28, %v33
    %v36 = vmul.f32 %v27, %v34
    %vm37 = vcmask 203776
    %v38 = vsel %vm37, %v36, 0.0
    %39 = vadd.xlane.f32.xlu0 %v38
    %v40 = vpop.xlane.xlu0 %39
    %v41 = vstv %s29
    %v42 = vadd.f32 %v40, %v41
    %v43 = vxor.u32 %v42, 2147483648
    %v44 = vmul.f32 %v43, 1.442695
    %v45 = vpow.pop %v44
    %v46 = vadd.f32 %v45, 1.0
    %v47 = vrcp.pop %v46
    %v48 = vmul.f32 1.0, %v47
    %vm49 = vcmask 7168
    %50 = vst.msk [vmem:[%s3] sm:$0xff] %vm49, %v48
    // Predicated region
    $region18: #{perceptron_forward.1} parent=1 // pred_check
      _
    $region19: #{perceptron_forward.1} parent=1 // pred_check_branch
      %52 = sbr.rel (0) target = $region21
    $region20: #{perceptron_forward.1} parent=1 // pred_region
      _
    $region21: #{perceptron_forward.1} parent=1 // pred_fallthru
      _
    // Predicated region
    $region22: #{perceptron_forward.1} parent=1 // pred_check
      _
    $region23: #{perceptron_forward.1} parent=1 // pred_check_branch
      %54 = sbr.rel (0) target = $region25
    $region24: #{perceptron_forward.1} parent=1 // pred_region
      _
    $region25: #{perceptron_forward.1} parent=1 // pred_fallthru
      _
    %55 = vsyncpa [#allocation4], 1

</llo_original>
